<compile_context>
chip_gen: v6e
topology: v6e:2x2x1
jax: 0.10.0
libtpu: 0.0.40
codegen_flags: <defaults>
</compile_context>

<pallas_src>
import jax
import jax.numpy as jnp
from jax.experimental import pallas as pl
from jax.experimental.pallas import tpu as pltpu


def mlp_kernel(x_ref, w1_ref, b1_ref, w2_ref, b2_ref, w3_ref, b3_ref, o_ref):
    # x_ref: (2, TN)   batch on lanes
    # w1: (64, 2)  b1: (64, 1)
    # w2: (64, 64) b2: (64, 1)
    # w3: (1, 64)  b3: (1, 1) scalar in SMEM
    # o_ref: (1, TN) lane-dense output tile
    x = x_ref[...]                        # (2, TN)
    w1 = w1_ref[...]                      # (64, 2)

    # fc1 (K=2): two VPU multiply-adds; an MXU contraction here would waste
    # a K=8-padded pass for only 2 real contraction elements.
    h1 = w1[:, 0:1] * x[0:1, :] + w1[:, 1:2] * x[1:2, :] + b1_ref[...]
    h1 = jnp.maximum(h1, 0.0)             # (64, TN)

    # fc2 (64x64): the only layer worth the MXU. Lane-dense (64, TN) result.
    h2 = jnp.dot(w2_ref[...], h1, preferred_element_type=jnp.float32) + b2_ref[...]
    h2 = jnp.maximum(h2, 0.0)             # (64, TN)

    # fc3: (1, 64) @ (64, TN) -> (1, TN). K=64 contraction, lane-dense store.
    out = jnp.dot(w3_ref[...], h2, preferred_element_type=jnp.float32)
    o_ref[...] = (out + b3_ref[0, 0]).astype(o_ref.dtype)


def param_model_forward(x, params, *, tile_n=512):
    """x: (B, 2) float32 -> (B, 1) float32."""
    w1, b1, w2, b2, w3, b3 = params
    B, d_in = x.shape
    assert d_in == 2

    # Batch lives on the lane axis: pad to a multiple of 128 lanes and pick a
    # lane tile (multiple of 128) that divides the padded batch.
    b_pad = 128 * pl.cdiv(B, 128)
    tn = min(tile_n, b_pad)
    b_pad = tn * pl.cdiv(b_pad, tn)

    # Transposed, zero-padded input: (2, b_pad).
    x_t = jnp.zeros((2, b_pad), jnp.float32).at[:, :B].set(x.T)

    grid = (b_pad // tn,)
    flops = 2 * b_pad * (2 * 64 + 64 * 64 + 64 * 1)
    bytes_accessed = 4 * (
        2 * b_pad + b_pad
        + w1.size + b1.size + w2.size + b2.size + w3.size + b3.size
    )

    out_t = pl.pallas_call(
        mlp_kernel,
        out_shape=jax.ShapeDtypeStruct((1, b_pad), jnp.float32),
        grid=grid,
        in_specs=[
            pl.BlockSpec((2, tn), lambda i: (0, i)),    # x tile (batch on lanes)
            pl.BlockSpec((64, 2), lambda i: (0, 0)),    # W1
            pl.BlockSpec((64, 1), lambda i: (0, 0)),    # b1
            pl.BlockSpec((64, 64), lambda i: (0, 0)),   # W2
            pl.BlockSpec((64, 1), lambda i: (0, 0)),    # b2
            pl.BlockSpec((1, 64), lambda i: (0, 0)),    # W3
            pl.BlockSpec(memory_space=pltpu.MemorySpace.SMEM),  # b3 scalar
        ],
        out_specs=pl.BlockSpec((1, tn), lambda i: (0, i)),
        compiler_params=pltpu.CompilerParams(
            dimension_semantics=("parallel",),
        ),
        cost_estimate=pl.CostEstimate(
            flops=flops, transcendentals=0, bytes_accessed=bytes_accessed),
    )(x_t, w1, b1, w2, b2, w3, b3)

    # (1, b_pad) -> (B, 1)
    return out_t[:, :B].T


def init_params(key):
    """PyTorch-style default Linear init (uniform +/- 1/sqrt(fan_in));
    weights stored as (out_features, in_features), biases as (out, 1)."""
    def linear(k, fan_in, fan_out):
        kw, kb = jax.random.split(k)
        bound = 1.0 / (fan_in ** 0.5)
        w = jax.random.uniform(kw, (fan_out, fan_in), jnp.float32, -bound, bound)
        b = jax.random.uniform(kb, (fan_out, 1), jnp.float32, -bound, bound)
        return w, b

    k1, k2, k3 = jax.random.split(key, 3)
    w1, b1 = linear(k1, 2, 64)
    w2, b2 = linear(k2, 64, 64)
    w3, b3 = linear(k3, 64, 1)
    return (w1, b1, w2, b2, w3, b3)


def reference_forward(x, params):
    w1, b1, w2, b2, w3, b3 = params
    h = jnp.maximum(x @ w1.T + b1.T, 0.0)
    h = jnp.maximum(h @ w2.T + b2.T, 0.0)
    return h @ w3.T + b3.T


if __name__ == "__main__":
    key = jax.random.PRNGKey(0)
    k_params, k_x = jax.random.split(key)

    params = init_params(k_params)
    # Small batch of 2-D inputs, consistent with nn.Linear(2, 64).
    x = jax.random.normal(k_x, (16, 2), dtype=jnp.float32)

    out = param_model_forward(x, params)
    out = jax.block_until_ready(out)

    ref = reference_forward(x, params)
    assert out.shape == (16, 1)
    assert jnp.allclose(out, ref, atol=1e-5, rtol=1e-5), "mismatch vs reference"

    print("KERNEL_OK")
</pallas_src>

<mosaic_0001>
module attributes {stable_mosaic.version = 11 : i64} {
  func.func @mlp_kernel(%arg0: i32, %arg1: memref<2x128xf32, #tpu.memory_space<vmem>>, %arg2: memref<64x2xf32, #tpu.memory_space<vmem>>, %arg3: memref<64x1xf32, #tpu.memory_space<vmem>>, %arg4: memref<64x64xf32, #tpu.memory_space<vmem>>, %arg5: memref<64x1xf32, #tpu.memory_space<vmem>>, %arg6: memref<1x64xf32, #tpu.memory_space<vmem>>, %arg7: memref<1x1xf32, #tpu.memory_space<smem>>, %arg8: memref<1x128xf32, #tpu.memory_space<vmem>>) attributes {dimension_semantics = [#tpu.dimension_semantics<parallel>], iteration_bounds = array<i64: 1>, scalar_prefetch = 0 : i64, scratch_operands = 0 : i64, tpu.core_type = #tpu.core_type<tc>, window_params = [{transform_indices = @transform_0, window_bounds = array<i64: 2, 128>}, {pipeline_mode = #tpu.pipeline_mode<synchronous>, transform_indices = @transform_1, window_bounds = array<i64: 64, 2>}, {pipeline_mode = #tpu.pipeline_mode<synchronous>, transform_indices = @transform_2, window_bounds = array<i64: 64, 1>}, {pipeline_mode = #tpu.pipeline_mode<synchronous>, transform_indices = @transform_3, window_bounds = array<i64: 64, 64>}, {pipeline_mode = #tpu.pipeline_mode<synchronous>, transform_indices = @transform_4, window_bounds = array<i64: 64, 1>}, {pipeline_mode = #tpu.pipeline_mode<synchronous>, transform_indices = @transform_5, window_bounds = array<i64: 1, 64>}, {transform_indices = @transform_6, window_bounds = array<i64: 1, 1>}, {transform_indices = @transform_7, window_bounds = array<i64: 1, 128>}]} {
    %c0 = arith.constant 0 : index
    %c0_0 = arith.constant 0 : index
    %0 = vector.load %arg1[%c0, %c0_0] : memref<2x128xf32, #tpu.memory_space<vmem>>, vector<2x128xf32>
    %c0_1 = arith.constant 0 : index
    %c0_2 = arith.constant 0 : index
    %1 = vector.load %arg2[%c0_1, %c0_2] : memref<64x2xf32, #tpu.memory_space<vmem>>, vector<64x2xf32>
    %2 = vector.extract_strided_slice %1 {offsets = [0, 0], sizes = [64, 1], strides = [1, 1]} : vector<64x2xf32> to vector<64x1xf32>
    %3 = vector.extract_strided_slice %0 {offsets = [0, 0], sizes = [1, 128], strides = [1, 1]} : vector<2x128xf32> to vector<1x128xf32>
    %4 = vector.broadcast %2 : vector<64x1xf32> to vector<64x128xf32>
    %5 = vector.broadcast %3 : vector<1x128xf32> to vector<64x128xf32>
    %6 = arith.mulf %4, %5 : vector<64x128xf32>
    %7 = vector.extract_strided_slice %1 {offsets = [0, 1], sizes = [64, 1], strides = [1, 1]} : vector<64x2xf32> to vector<64x1xf32>
    %8 = vector.extract_strided_slice %0 {offsets = [1, 0], sizes = [1, 128], strides = [1, 1]} : vector<2x128xf32> to vector<1x128xf32>
    %9 = vector.broadcast %7 : vector<64x1xf32> to vector<64x128xf32>
    %10 = vector.broadcast %8 : vector<1x128xf32> to vector<64x128xf32>
    %11 = arith.mulf %9, %10 : vector<64x128xf32>
    %12 = arith.addf %6, %11 : vector<64x128xf32>
    %c0_3 = arith.constant 0 : index
    %c0_4 = arith.constant 0 : index
    %13 = vector.load %arg3[%c0_3, %c0_4] : memref<64x1xf32, #tpu.memory_space<vmem>>, vector<64x1xf32>
    %14 = vector.broadcast %13 : vector<64x1xf32> to vector<64x128xf32>
    %15 = arith.addf %12, %14 : vector<64x128xf32>
    %cst = arith.constant 0.000000e+00 : f32
    %16 = vector.broadcast %cst : f32 to vector<64x128xf32>
    %17 = arith.maximumf %15, %16 : vector<64x128xf32>
    %c0_5 = arith.constant 0 : index
    %c0_6 = arith.constant 0 : index
    %18 = vector.load %arg4[%c0_5, %c0_6] : memref<64x64xf32, #tpu.memory_space<vmem>>, vector<64x64xf32>
    %cst_7 = arith.constant dense<0.000000e+00> : vector<64x128xf32>
    %19 = tpu.matmul %18, %17, %cst_7 {dimension_numbers = #tpu.dot_dimension_numbers<[1], [0], [0], [1], [0, 0, 1, 1], [], []>} : vector<64x64xf32>, vector<64x128xf32>, vector<64x128xf32> -> vector<64x128xf32>
    %c0_8 = arith.constant 0 : index
    %c0_9 = arith.constant 0 : index
    %20 = vector.load %arg5[%c0_8, %c0_9] : memref<64x1xf32, #tpu.memory_space<vmem>>, vector<64x1xf32>
    %21 = vector.broadcast %20 : vector<64x1xf32> to vector<64x128xf32>
    %22 = arith.addf %19, %21 : vector<64x128xf32>
    %cst_10 = arith.constant 0.000000e+00 : f32
    %23 = vector.broadcast %cst_10 : f32 to vector<64x128xf32>
    %24 = arith.maximumf %22, %23 : vector<64x128xf32>
    %c0_11 = arith.constant 0 : index
    %c0_12 = arith.constant 0 : index
    %25 = vector.load %arg6[%c0_11, %c0_12] : memref<1x64xf32, #tpu.memory_space<vmem>>, vector<1x64xf32>
    %cst_13 = arith.constant dense<0.000000e+00> : vector<1x128xf32>
    %26 = tpu.matmul %25, %24, %cst_13 {dimension_numbers = #tpu.dot_dimension_numbers<[1], [0], [0], [1], [0, 0, 1, 1], [], []>} : vector<1x64xf32>, vector<64x128xf32>, vector<1x128xf32> -> vector<1x128xf32>
    %c0_14 = arith.constant 0 : index
    %c0_15 = arith.constant 0 : index
    %27 = memref.load %arg7[%c0_14, %c0_15] : memref<1x1xf32, #tpu.memory_space<smem>>
    %28 = vector.broadcast %27 : f32 to vector<1x128xf32>
    %29 = arith.addf %26, %28 : vector<1x128xf32>
    %c0_16 = arith.constant 0 : index
    %c0_17 = arith.constant 0 : index
    %30 = vector.load %arg8[%c0_16, %c0_17] : memref<1x128xf32, #tpu.memory_space<vmem>>, vector<1x128xf32>
    tpu.vector_store %arg8[%c0_16, %c0_17], %29 {strides = array<i32>} : memref<1x128xf32, #tpu.memory_space<vmem>>, vector<1x128xf32>,
    return
  }
  func.func @transform_0(%arg0: i32) -> (i32, i32) {
    %c0_i32 = arith.constant 0 : i32
    %c0_i32_0 = arith.constant 0 : i32
    return %c0_i32, %arg0 : i32, i32
  }
  func.func @transform_1(%arg0: i32) -> (i32, i32) {
    %c0_i32 = arith.constant 0 : i32
    %c0_i32_0 = arith.constant 0 : i32
    %c0_i32_1 = arith.constant 0 : i32
    return %c0_i32, %c0_i32_0 : i32, i32
  }
  func.func @transform_2(%arg0: i32) -> (i32, i32) {
    %c0_i32 = arith.constant 0 : i32
    %c0_i32_0 = arith.constant 0 : i32
    %c0_i32_1 = arith.constant 0 : i32
    return %c0_i32, %c0_i32_0 : i32, i32
  }
  func.func @transform_3(%arg0: i32) -> (i32, i32) {
    %c0_i32 = arith.constant 0 : i32
    %c0_i32_0 = arith.constant 0 : i32
    %c0_i32_1 = arith.constant 0 : i32
    return %c0_i32, %c0_i32_0 : i32, i32
  }
  func.func @transform_4(%arg0: i32) -> (i32, i32) {
    %c0_i32 = arith.constant 0 : i32
    %c0_i32_0 = arith.constant 0 : i32
    %c0_i32_1 = arith.constant 0 : i32
    return %c0_i32, %c0_i32_0 : i32, i32
  }
  func.func @transform_5(%arg0: i32) -> (i32, i32) {
    %c0_i32 = arith.constant 0 : i32
    %c0_i32_0 = arith.constant 0 : i32
    %c0_i32_1 = arith.constant 0 : i32
    return %c0_i32, %c0_i32_0 : i32, i32
  }
  func.func @transform_6(%arg0: i32) -> (i32, i32) {
    %c0_i32 = arith.constant 0 : i32
    %c0_i32_0 = arith.constant 0 : i32
    %c0_i32_1 = arith.constant 0 : i32
    return %c0_i32, %c0_i32_0 : i32, i32
  }
  func.func @transform_7(%arg0: i32) -> (i32, i32) {
    %c0_i32 = arith.constant 0 : i32
    %c0_i32_0 = arith.constant 0 : i32
    return %c0_i32, %arg0 : i32, i32
  }
}

</mosaic_0001>

<llo_original>
// kernel: tpu_custom_call.1
$region0: #{tpu_custom_call.1}
  #allocation0 [shape = 'u32[]', space=smem, size = 0x4, offset = 0x4, fixed_abs, tag = 'smem constant byte address 0x4 - core index']
  #allocation1 [shape = 'u32[144,128]{1,0:T(1,128)}', space=vmem, size = 0x12000, scoped, tag = 'internal scratch']
  #allocation2 [shape = 'f32[1,1]{1,0:T(1,128)S(6)}', space=smem, size = 0x200, scoped, tag = 'scoped memory for tpu_custom_call.1']
  %s0 = inlined_call_operand.vmem [shape: f32[2,128], index: 0, kind: input, shape index: {}]
  %s1 = inlined_call_operand.vmem [shape: f32[64,2], index: 1, kind: input, shape index: {}]
  %s2 = inlined_call_operand.vmem [shape: f32[64,1], index: 2, kind: input, shape index: {}]
  %s3 = inlined_call_operand.vmem [shape: f32[64,64], index: 3, kind: input, shape index: {}]
  %s4 = inlined_call_operand.vmem [shape: f32[64,1], index: 4, kind: input, shape index: {}]
  %s5 = inlined_call_operand.vmem [shape: f32[1,64], index: 5, kind: input, shape index: {}]
  %s6 = inlined_call_operand.<no memory space> [shape: f32[1,1], index: 6, kind: input, shape index: {}]
  %s7 = inlined_call_operand.hbm [shape: f32[1,128], index: 7, kind: output, shape index: {}]
  %s8 = sld [smem:[#allocation0]]
  $region38: #{tpu_custom_call.1} parent=0
    _
  %s10 = ssub.s32 1, %s8
  %s11 = scalar_select 0, %s10, %s8
  %12 = sst [smem:[#allocation2]] %s6
  $region1: #{tpu_custom_call.1} parent=0
    #allocation3 [shape = 'u8[512]{0}', space=vmem, size = 0x400, scoped, tag = 'output window, operand 0, single buffered']
    #allocation4 [shape = 's32[1]{0}', space=sflag, size = 0x4, scoped, tag = 'scoped memory for tpu_custom_call.1']
    %13 = vsyncpa [#allocation4], 0
    // Predicated region
    $region2: #{tpu_custom_call.1} parent=1 // pred_check
      _
    $region3: #{tpu_custom_call.1} parent=1 // pred_check_branch
      %15 = sbr.rel (0) target = $region5
    $region4: #{tpu_custom_call.1} parent=1 // pred_region
      _
    $region5: #{tpu_custom_call.1} parent=1 // pred_fallthru
      _
    // Predicated region
    $region6: #{tpu_custom_call.1} parent=1 // pred_check
      _
    $region7: #{tpu_custom_call.1} parent=1 // pred_check_branch
      %17 = sbr.rel (0) target = $region9
    $region8: #{tpu_custom_call.1} parent=1 // pred_region
      _
    $region9: #{tpu_custom_call.1} parent=1 // pred_fallthru
      _
    // Predicated region
    $region10: #{tpu_custom_call.1} parent=1 // pred_check
      _
    $region11: #{tpu_custom_call.1} parent=1 // pred_check_branch
      %19 = sbr.rel (0) target = $region13
    $region12: #{tpu_custom_call.1} parent=1 // pred_region
      _
    $region13: #{tpu_custom_call.1} parent=1 // pred_fallthru
      _
    // Predicated region
    $region14: #{tpu_custom_call.1} parent=1 // pred_check
      _
    $region15: #{tpu_custom_call.1} parent=1 // pred_check_branch
      %21 = sbr.rel (0) target = $region17
    $region16: #{tpu_custom_call.1} parent=1 // pred_region
      _
    $region17: #{tpu_custom_call.1} parent=1 // pred_fallthru
      _
    // Predicated region
    $region18: #{tpu_custom_call.1} parent=1 // pred_check
      _
    $region19: #{tpu_custom_call.1} parent=1 // pred_check_branch
      %23 = sbr.rel (0) target = $region21
    $region20: #{tpu_custom_call.1} parent=1 // pred_region
      _
    $region21: #{tpu_custom_call.1} parent=1 // pred_fallthru
      _
    // Predicated region
    $region22: #{tpu_custom_call.1} parent=1 // pred_check
      _
    $region23: #{tpu_custom_call.1} parent=1 // pred_check_branch
      %25 = sbr.rel (0) target = $region25
    $region24: #{tpu_custom_call.1} parent=1 // pred_region
      _
    $region25: #{tpu_custom_call.1} parent=1 // pred_fallthru
      _
    // Predicated region
    $region26: #{tpu_custom_call.1} parent=1 // pred_check
      _
    $region27: #{tpu_custom_call.1} parent=1 // pred_check_branch
      %27 = sbr.rel (0) target = $region29
    $region28: #{tpu_custom_call.1} parent=1 // pred_region
      _
    $region29: #{tpu_custom_call.1} parent=1 // pred_fallthru
      _
    %v28 = vld [vmem:[%s0] sm:$0x3]
    %v29 = vld [vmem:[%s1] sm:$0xff]
    %v30 = vld [vmem:[%s1 + $0x8] sm:$0xff]
    %v31 = vld [vmem:[%s1 + $0x10] sm:$0xff]
    %v32 = vld [vmem:[%s1 + $0x18] sm:$0xff]
    %v33 = vld [vmem:[%s1 + $0x20] sm:$0xff]
    %v34 = vld [vmem:[%s1 + $0x28] sm:$0xff]
    %v35 = vld [vmem:[%s1 + $0x30] sm:$0xff]
    %v36 = vld [vmem:[%s1 + $0x38] sm:$0xff]
    %38 = vset.pattern.permute.xlu0 0
    %39 = vperm.xlu0 %38, %v29
    %v40 = vpop.permute.xlu0 %39
    %43 = vset.pattern.permute.xlu0 0
    %44 = vperm.xlu0 %43, %v30
    %v45 = vpop.permute.xlu0 %44
    %48 = vset.pattern.permute.xlu0 0
    %49 = vperm.xlu0 %48, %v31
    %v50 = vpop.permute.xlu0 %49
    %53 = vset.pattern.permute.xlu0 0
    %54 = vperm.xlu0 %53, %v32
    %v55 = vpop.permute.xlu0 %54
    %58 = vset.pattern.permute.xlu0 0
    %59 = vperm.xlu0 %58, %v33
    %v60 = vpop.permute.xlu0 %59
    %63 = vset.pattern.permute.xlu0 0
    %64 = vperm.xlu0 %63, %v34
    %v65 = vpop.permute.xlu0 %64
    %68 = vset.pattern.permute.xlu0 0
    %69 = vperm.xlu0 %68, %v35
    %v70 = vpop.permute.xlu0 %69
    %73 = vset.pattern.permute.xlu0 0
    %74 = vperm.xlu0 %73, %v36
    %v75 = vpop.permute.xlu0 %74
    %v77 = vlaneseq
    %v78 = vshrl.u32 %v77, 7
    %v79 = vsub.s32 0, %v78
    %v80 = vrot.slane %v28, %v79
    %v81 = vmul.f32 %v40, %v80
    %v82 = vmul.f32 %v45, %v80
    %v83 = vmul.f32 %v50, %v80
    %v84 = vmul.f32 %v55, %v80
    %v85 = vmul.f32 %v60, %v80
    %v86 = vmul.f32 %v65, %v80
    %v87 = vmul.f32 %v70, %v80
    %v88 = vmul.f32 %v75, %v80
    %89 = vset.pattern.permute.xlu0 1
    %90 = vperm.xlu0 %89, %v29
    %v91 = vpop.permute.xlu0 %90
    %93 = vset.pattern.permute.xlu0 1
    %94 = vperm.xlu0 %93, %v30
    %v95 = vpop.permute.xlu0 %94
    %97 = vset.pattern.permute.xlu0 1
    %98 = vperm.xlu0 %97, %v31
    %v99 = vpop.permute.xlu0 %98
    %101 = vset.pattern.permute.xlu0 1
    %102 = vperm.xlu0 %101, %v32
    %v103 = vpop.permute.xlu0 %102
    %105 = vset.pattern.permute.xlu0 1
    %106 = vperm.xlu0 %105, %v33
    %v107 = vpop.permute.xlu0 %106
    %109 = vset.pattern.permute.xlu0 1
    %110 = vperm.xlu0 %109, %v34
    %v111 = vpop.permute.xlu0 %110
    %113 = vset.pattern.permute.xlu0 1
    %114 = vperm.xlu0 %113, %v35
    %v115 = vpop.permute.xlu0 %114
    %117 = vset.pattern.permute.xlu0 1
    %118 = vperm.xlu0 %117, %v36
    %v119 = vpop.permute.xlu0 %118
    %v121 = vlaneseq
    %v122 = vshrl.u32 %v121, 7
    %v123 = vsub.s32 1, %v122
    %v124 = vrot.slane %v28, %v123
    %v125 = vmul.f32 %v91, %v124
    %v126 = vmul.f32 %v95, %v124
    %v127 = vmul.f32 %v99, %v124
    %v128 = vmul.f32 %v103, %v124
    %v129 = vmul.f32 %v107, %v124
    %v130 = vmul.f32 %v111, %v124
    %v131 = vmul.f32 %v115, %v124
    %v132 = vmul.f32 %v119, %v124
    %v133 = vadd.f32 %v81, %v125
    %v134 = vadd.f32 %v82, %v126
    %v135 = vadd.f32 %v83, %v127
    %v136 = vadd.f32 %v84, %v128
    %v137 = vadd.f32 %v85, %v129
    %v138 = vadd.f32 %v86, %v130
    %v139 = vadd.f32 %v87, %v131
    %v140 = vadd.f32 %v88, %v132
    %v141 = vld [vmem:[%s2] sm:$0xff]
    %v142 = vld [vmem:[%s2 + $0x8] sm:$0xff]
    %v143 = vld [vmem:[%s2 + $0x10] sm:$0xff]
    %v144 = vld [vmem:[%s2 + $0x18] sm:$0xff]
    %v145 = vld [vmem:[%s2 + $0x20] sm:$0xff]
    %v146 = vld [vmem:[%s2 + $0x28] sm:$0xff]
    %v147 = vld [vmem:[%s2 + $0x30] sm:$0xff]
    %v148 = vld [vmem:[%s2 + $0x38] sm:$0xff]
    %150 = vset.pattern.permute.xlu0 0
    %151 = vperm.xlu0 %150, %v141
    %v152 = vpop.permute.xlu0 %151
    %155 = vset.pattern.permute.xlu0 0
    %156 = vperm.xlu0 %155, %v142
    %v157 = vpop.permute.xlu0 %156
    %160 = vset.pattern.permute.xlu0 0
    %161 = vperm.xlu0 %160, %v143
    %v162 = vpop.permute.xlu0 %161
    %165 = vset.pattern.permute.xlu0 0
    %166 = vperm.xlu0 %165, %v144
    %v167 = vpop.permute.xlu0 %166
    %170 = vset.pattern.permute.xlu0 0
    %171 = vperm.xlu0 %170, %v145
    %v172 = vpop.permute.xlu0 %171
    %175 = vset.pattern.permute.xlu0 0
    %176 = vperm.xlu0 %175, %v146
    %v177 = vpop.permute.xlu0 %176
    %180 = vset.pattern.permute.xlu0 0
    %181 = vperm.xlu0 %180, %v147
    %v182 = vpop.permute.xlu0 %181
    %185 = vset.pattern.permute.xlu0 0
    %186 = vperm.xlu0 %185, %v148
    %v187 = vpop.permute.xlu0 %186
    %v189 = vadd.f32 %v133, %v152
    %v190 = vadd.f32 %v134, %v157
    %v191 = vadd.f32 %v135, %v162
    %v192 = vadd.f32 %v136, %v167
    %v193 = vadd.f32 %v137, %v172
    %v194 = vadd.f32 %v138, %v177
    %v195 = vadd.f32 %v139, %v182
    %v196 = vadd.f32 %v140, %v187
    %v197 = vmax.f32 %v189, 0.0
    %v198 = vmax.f32 %v190, 0.0
    %v199 = vmax.f32 %v191, 0.0
    %v200 = vmax.f32 %v192, 0.0
    %v201 = vmax.f32 %v193, 0.0
    %v202 = vmax.f32 %v194, 0.0
    %v203 = vmax.f32 %v195, 0.0
    %v204 = vmax.f32 %v196, 0.0
    %v205 = vld [vmem:[%s3] sm:$0xff]
    %v206 = vld [vmem:[%s3 + $0x8] sm:$0xff]
    %v207 = vld [vmem:[%s3 + $0x10] sm:$0xff]
    %v208 = vld [vmem:[%s3 + $0x18] sm:$0xff]
    %v209 = vld [vmem:[%s3 + $0x20] sm:$0xff]
    %v210 = vld [vmem:[%s3 + $0x28] sm:$0xff]
    %v211 = vld [vmem:[%s3 + $0x30] sm:$0xff]
    %v212 = vld [vmem:[%s3 + $0x38] sm:$0xff]
    %v213 = vld [vmem:[%s4] sm:$0xff]
    %v214 = vld [vmem:[%s4 + $0x8] sm:$0xff]
    %v215 = vld [vmem:[%s4 + $0x10] sm:$0xff]
    %v216 = vld [vmem:[%s4 + $0x18] sm:$0xff]
    %v217 = vld [vmem:[%s4 + $0x20] sm:$0xff]
    %v218 = vld [vmem:[%s4 + $0x28] sm:$0xff]
    %v219 = vld [vmem:[%s4 + $0x30] sm:$0xff]
    %v220 = vld [vmem:[%s4 + $0x38] sm:$0xff]
    %222 = vset.pattern.permute.xlu0 0
    %223 = vperm.xlu0 %222, %v213
    %v224 = vpop.permute.xlu0 %223
    %227 = vset.pattern.permute.xlu0 0
    %228 = vperm.xlu0 %227, %v214
    %v229 = vpop.permute.xlu0 %228
    %232 = vset.pattern.permute.xlu0 0
    %233 = vperm.xlu0 %232, %v215
    %v234 = vpop.permute.xlu0 %233
    %237 = vset.pattern.permute.xlu0 0
    %238 = vperm.xlu0 %237, %v216
    %v239 = vpop.permute.xlu0 %238
    %242 = vset.pattern.permute.xlu0 0
    %243 = vperm.xlu0 %242, %v217
    %v244 = vpop.permute.xlu0 %243
    %247 = vset.pattern.permute.xlu0 0
    %248 = vperm.xlu0 %247, %v218
    %v249 = vpop.permute.xlu0 %248
    %252 = vset.pattern.permute.xlu0 0
    %253 = vperm.xlu0 %252, %v219
    %v254 = vpop.permute.xlu0 %253
    %257 = vset.pattern.permute.xlu0 0
    %258 = vperm.xlu0 %257, %v220
    %v259 = vpop.permute.xlu0 %258
    %vm261 = vcmask 523264
    %v263 = vsel %vm261, %v205, 0
    %v266 = vsel %vm261, %v206, 0
    %v269 = vsel %vm261, %v207, 0
    %v272 = vsel %vm261, %v208, 0
    %v275 = vsel %vm261, %v209, 0
    %v278 = vsel %vm261, %v210, 0
    %v281 = vsel %vm261, %v211, 0
    %v284 = vsel %vm261, %v212, 0
    %286 = vmatprep.subr.mxu0 0.0
    %287 = vmatpush1.msra.mxu0 0.0
    %288 = vmatprep.subr.mxu0 0.0
    %289 = vmatpush1.msra.mxu0 0.0
    %290 = vmatprep.subr.mxu0 0.0
    %291 = vmatpush1.msra.mxu0 0.0
    %292 = vmatprep.subr.mxu0 0.0
    %293 = vmatpush1.msra.mxu0 0.0
    %294 = vmatprep.subr.mxu0 0.0
    %295 = vmatpush1.msra.mxu0 0.0
    %296 = vmatprep.subr.mxu0 0.0
    %297 = vmatpush1.msra.mxu0 0.0
    %298 = vmatprep.subr.mxu0 0.0
    %299 = vmatpush1.msra.mxu0 0.0
    %300 = vmatprep.subr.mxu0 0.0
    %301 = vmatpush1.msra.mxu0 0.0
    %302 = vmatprep.subr.mxu0 0.0
    %303 = vmatpush1.msra.mxu0 %v204
    %304 = vmatprep.subr.mxu0 0.0
    %305 = vmatpush1.msra.mxu0 %v203
    %306 = vmatprep.subr.mxu0 0.0
    %307 = vmatpush1.msra.mxu0 %v202
    %308 = vmatprep.subr.mxu0 0.0
    %309 = vmatpush1.msra.mxu0 %v201
    %310 = vmatprep.subr.mxu0 0.0
    %311 = vmatpush1.msra.mxu0 %v200
    %312 = vmatprep.subr.mxu0 0.0
    %313 = vmatpush1.msra.mxu0 %v199
    %314 = vmatprep.subr.mxu0 0.0
    %315 = vmatpush1.msra.mxu0 %v198
    %316 = vmatprep.subr.mxu0 0.0
    %317 = vmatpush1.msra.mxu0 %v197
    %318 = vmatprep.subr.mxu0 0.0
    %319 = vmatpush2.msra.mxu0 0.0
    %320 = vmatprep.subr.mxu0 0.0
    %321 = vmatpush2.msra.mxu0 0.0
    %322 = vmatprep.subr.mxu0 0.0
    %323 = vmatpush2.msra.mxu0 0.0
    %324 = vmatprep.subr.mxu0 0.0
    %325 = vmatpush2.msra.mxu0 0.0
    %326 = vmatprep.subr.mxu0 0.0
    %327 = vmatpush2.msra.mxu0 0.0
    %328 = vmatprep.subr.mxu0 0.0
    %329 = vmatpush2.msra.mxu0 0.0
    %330 = vmatprep.subr.mxu0 0.0
    %331 = vmatpush2.msra.mxu0 0.0
    %332 = vmatprep.subr.mxu0 0.0
    %333 = vmatpush2.msra.mxu0 0.0
    %334 = vmatprep.subr.mxu0 0.0
    %335 = vmatpush2.msra.mxu0 0.0
    %336 = vmatprep.subr.mxu0 0.0
    %337 = vmatpush2.msra.mxu0 0.0
    %338 = vmatprep.subr.mxu0 0.0
    %339 = vmatpush2.msra.mxu0 0.0
    %340 = vmatprep.subr.mxu0 0.0
    %341 = vmatpush2.msra.mxu0 0.0
    %342 = vmatprep.subr.mxu0 0.0
    %343 = vmatpush2.msra.mxu0 0.0
    %344 = vmatprep.subr.mxu0 0.0
    %345 = vmatpush2.msra.mxu0 0.0
    %346 = vmatprep.subr.mxu0 0.0
    %347 = vmatpush2.msra.mxu0 0.0
    %348 = vmatprep.subr.mxu0 0.0
    %349 = vmatpush2.msra.mxu0 0.0
    %350 = vmatprep.mubr.f32.mxu0 0.0
    %351 = vmatmul.mubr.f32.gmra.mxu0 %v263
    %v352 = vpop.f32.mrf.mxu0
    %v353 = vadd.f32 %v224, %v352
    %v354 = vpop.f32.mrf.mxu0
    %355 = vmatprep.mubr.f32.mxu0 0.0
    %356 = vmatmul.mubr.f32.gmra.mxu0 %v266
    %v357 = vpop.f32.mrf.mxu0
    %v358 = vadd.f32 %v229, %v357
    %v359 = vpop.f32.mrf.mxu0
    %360 = vmatprep.mubr.f32.mxu0 0.0
    %361 = vmatmul.mubr.f32.gmra.mxu0 %v269
    %v362 = vpop.f32.mrf.mxu0
    %v363 = vadd.f32 %v234, %v362
    %v364 = vpop.f32.mrf.mxu0
    %365 = vmatprep.mubr.f32.mxu0 0.0
    %366 = vmatmul.mubr.f32.gmra.mxu0 %v272
    %v367 = vpop.f32.mrf.mxu0
    %v368 = vadd.f32 %v239, %v367
    %v369 = vpop.f32.mrf.mxu0
    %370 = vmatprep.mubr.f32.mxu0 0.0
    %371 = vmatmul.mubr.f32.gmra.mxu0 %v275
    %v372 = vpop.f32.mrf.mxu0
    %v373 = vadd.f32 %v244, %v372
    %v374 = vpop.f32.mrf.mxu0
    %375 = vmatprep.mubr.f32.mxu0 0.0
    %376 = vmatmul.mubr.f32.gmra.mxu0 %v278
    %v377 = vpop.f32.mrf.mxu0
    %v378 = vadd.f32 %v249, %v377
    %v379 = vpop.f32.mrf.mxu0
    %380 = vmatprep.mubr.f32.mxu0 0.0
    %381 = vmatmul.mubr.f32.gmra.mxu0 %v281
    %v382 = vpop.f32.mrf.mxu0
    %v383 = vadd.f32 %v254, %v382
    %v384 = vpop.f32.mrf.mxu0
    %385 = vmatprep.mubr.f32.mxu0 0.0
    %386 = vmatmul.mubr.f32.gmra.mxu0 %v284
    %v387 = vpop.f32.mrf.mxu0
    %v388 = vadd.f32 %v259, %v387
    %v389 = vpop.f32.mrf.mxu0
    %390 = vdwg.mxu0
    %v391 = vmax.f32 %v353, 0.0
    %v392 = vmax.f32 %v358, 0.0
    %v393 = vmax.f32 %v363, 0.0
    %v394 = vmax.f32 %v368, 0.0
    %v395 = vmax.f32 %v373, 0.0
    %v396 = vmax.f32 %v378, 0.0
    %v397 = vmax.f32 %v383, 0.0
    %v398 = vmax.f32 %v388, 0.0
    %v399 = vld [vmem:[%s5] sm:$0x1]
    %s400 = sld [smem:[#allocation2]]
    %v401 = vstv %s400
    %v403 = vsel %vm261, %v399, 0
    %405 = vmatprep.subr.mxu0 0.0
    %406 = vmatpush1.msra.mxu0 0.0
    %407 = vmatprep.subr.mxu0 0.0
    %408 = vmatpush1.msra.mxu0 0.0
    %409 = vmatprep.subr.mxu0 0.0
    %410 = vmatpush1.msra.mxu0 0.0
    %411 = vmatprep.subr.mxu0 0.0
    %412 = vmatpush1.msra.mxu0 0.0
    %413 = vmatprep.subr.mxu0 0.0
    %414 = vmatpush1.msra.mxu0 0.0
    %415 = vmatprep.subr.mxu0 0.0
    %416 = vmatpush1.msra.mxu0 0.0
    %417 = vmatprep.subr.mxu0 0.0
    %418 = vmatpush1.msra.mxu0 0.0
    %419 = vmatprep.subr.mxu0 0.0
    %420 = vmatpush1.msra.mxu0 0.0
    %421 = vmatprep.subr.mxu0 0.0
    %422 = vmatpush1.msra.mxu0 %v398
    %423 = vmatprep.subr.mxu0 0.0
    %424 = vmatpush1.msra.mxu0 %v397
    %425 = vmatprep.subr.mxu0 0.0
    %426 = vmatpush1.msra.mxu0 %v396
    %427 = vmatprep.subr.mxu0 0.0
    %428 = vmatpush1.msra.mxu0 %v395
    %429 = vmatprep.subr.mxu0 0.0
    %430 = vmatpush1.msra.mxu0 %v394
    %431 = vmatprep.subr.mxu0 0.0
    %432 = vmatpush1.msra.mxu0 %v393
    %433 = vmatprep.subr.mxu0 0.0
    %434 = vmatpush1.msra.mxu0 %v392
    %435 = vmatprep.subr.mxu0 0.0
    %436 = vmatpush1.msra.mxu0 %v391
    %437 = vmatprep.subr.mxu0 0.0
    %438 = vmatpush2.msra.mxu0 0.0
    %439 = vmatprep.subr.mxu0 0.0
    %440 = vmatpush2.msra.mxu0 0.0
    %441 = vmatprep.subr.mxu0 0.0
    %442 = vmatpush2.msra.mxu0 0.0
    %443 = vmatprep.subr.mxu0 0.0
    %444 = vmatpush2.msra.mxu0 0.0
    %445 = vmatprep.subr.mxu0 0.0
    %446 = vmatpush2.msra.mxu0 0.0
    %447 = vmatprep.subr.mxu0 0.0
    %448 = vmatpush2.msra.mxu0 0.0
    %449 = vmatprep.subr.mxu0 0.0
    %450 = vmatpush2.msra.mxu0 0.0
    %451 = vmatprep.subr.mxu0 0.0
    %452 = vmatpush2.msra.mxu0 0.0
    %453 = vmatprep.subr.mxu0 0.0
    %454 = vmatpush2.msra.mxu0 0.0
    %455 = vmatprep.subr.mxu0 0.0
    %456 = vmatpush2.msra.mxu0 0.0
    %457 = vmatprep.subr.mxu0 0.0
    %458 = vmatpush2.msra.mxu0 0.0
    %459 = vmatprep.subr.mxu0 0.0
    %460 = vmatpush2.msra.mxu0 0.0
    %461 = vmatprep.subr.mxu0 0.0
    %462 = vmatpush2.msra.mxu0 0.0
    %463 = vmatprep.subr.mxu0 0.0
    %464 = vmatpush2.msra.mxu0 0.0
    %465 = vmatprep.subr.mxu0 0.0
    %466 = vmatpush2.msra.mxu0 0.0
    %467 = vmatprep.subr.mxu0 0.0
    %468 = vmatpush2.msra.mxu0 0.0
    %469 = vmatprep.mubr.f32.mxu0 0.0
    %470 = vmatmul.mubr.f32.gmra.mxu0 %v403
    %v471 = vpop.f32.mrf.mxu0
    %v472 = vadd.f32 %v401, %v471
    %v473 = vpop.f32.mrf.mxu0
    %474 = vdwg.mxu0
    %475 = vst [vmem:[#allocation3] sm:$0x1] %v472
    // Predicated region
    $region30: #{tpu_custom_call.1} parent=1 // pred_check
      _
    $region31: #{tpu_custom_call.1} parent=1 // pred_check_branch
      %477 = sbr.rel (0) target = $region33
    $region32: #{tpu_custom_call.1} parent=1 // pred_region
      %s479 = ssub.s32 16, 16
      %480 = vsyncadd [#allocation4], %s479
      %s482 = sshll.u32 [#allocation3], 4
      %s483 = int_to_ptr.vmem [resolvable:$true] %s482
      %485 = dma.vmem_to_hbm [thread:$0]  %s483, 16, %s7, [#allocation4]
    $region33: #{tpu_custom_call.1} parent=1 // pred_fallthru
      _
    // Predicated region
    $region34: #{tpu_custom_call.1} parent=1 // pred_check
      _
    $region35: #{tpu_custom_call.1} parent=1 // pred_check_branch
      %487 = sbr.rel (0) target = $region37
    $region36: #{tpu_custom_call.1} parent=1 // pred_region
      %488 = dma.done [#allocation4], 16
    $region37: #{tpu_custom_call.1} parent=1 // pred_fallthru
      _
    %489 = vsyncpa [#allocation4], 1

</llo_original>
